<compile_context>
chip_gen: v7x
topology: tpu7x:2x2x1
jax: 0.10.0
libtpu: 0.0.40
codegen_flags: <defaults>
</compile_context>

<pallas_src>
import functools

import jax
import jax.numpy as jnp
from jax.experimental import pallas as pl
from jax.experimental.pallas import tpu as pltpu

_LANES = 128


def _cdiv(a, b):
    return -(-a // b)


def _chip_generation():
    """Best-effort TPU generation: 7 = v7x, 6 = v6e, 5 = v5e/older/unknown."""
    try:
        kind = jax.devices()[0].device_kind.lower()
    except Exception:
        return 5
    if "v6" in kind:
        return 6
    if "v5" in kind or "v4" in kind or "v3" in kind or "v2" in kind:
        return 5
    if "7" in kind:
        return 7
    return 5


def _scaled_tanh_kernel(x_ref, o_ref, *, compute_dtype):
    # tanh lowers to the EUP; mul/add are VPU elementwise.  Kernel is
    # HBM-bandwidth-bound, so the compute hides under the DMA.
    x = x_ref[...].astype(compute_dtype)
    o_ref[...] = (0.5 * jnp.tanh(x) + 0.5).astype(o_ref.dtype)


def scaled_tanh(x):
    """y = 0.5 * (tanh(x) + 1), elementwise, computed in a Pallas TPU kernel."""
    orig_shape = x.shape
    dtype = x.dtype
    total = x.size
    itemsize = jnp.dtype(dtype).itemsize
    gen = _chip_generation()

    # Generation-aware contiguous block size (see header comment).
    if gen >= 7:
        block_bytes = 8 * 1024 * 1024
        vmem_limit_bytes = 48 << 20
    elif gen == 6:
        block_bytes = 4 * 1024 * 1024
        vmem_limit_bytes = None
    else:
        block_bytes = 2 * 1024 * 1024
        vmem_limit_bytes = None

    # Native bf16 tanh on v6e/v7x; f32 upcast on v5e and for non-bf16 inputs.
    if dtype == jnp.bfloat16 and gen >= 6:
        compute_dtype = jnp.bfloat16
    else:
        compute_dtype = jnp.float32

    # Native sublane tile: 8 sublanes for 32-bit, 16 for bf16, 32 for 8-bit.
    sublanes = 8 * max(1, 4 // itemsize)

    x_flat = x.reshape(-1)
    # Lane-aligned prefix through the kernel; tiny (<128) tail in plain jnp.
    aligned = (total // _LANES) * _LANES
    rows = aligned // _LANES

    if rows == 0:
        # Input smaller than one lane row -- not worth a kernel launch.
        out_flat = (0.5 * (jnp.tanh(x_flat.astype(compute_dtype)) + 1.0)).astype(dtype)
        return out_flat.reshape(orig_shape)

    x2d = (x_flat if aligned == total else x_flat[:aligned]).reshape(rows, _LANES)

    max_rows = max(1, block_bytes // (_LANES * itemsize))
    if rows <= sublanes:
        # Block equals the full (small) array dims -- always a legal block shape.
        block_rows = rows
    else:
        block_rows = max(sublanes, (min(rows, max_rows) // sublanes) * sublanes)
        if gen >= 7 and rows >= 2 * sublanes:
            # Keep >=2 (and, when few, an even number of) grid steps so the
            # "parallel" axis can be balanced across v7x's 2 TensorCores.
            steps = _cdiv(rows, block_rows)
            if steps < 2:
                steps = 2
            elif steps < 8 and steps % 2:
                steps += 1
            block_rows = max(sublanes, _cdiv(_cdiv(rows, steps), sublanes) * sublanes)

    grid = (_cdiv(rows, block_rows),)  # ragged last block handled by Pallas

    out2d = pl.pallas_call(
        functools.partial(_scaled_tanh_kernel, compute_dtype=compute_dtype),
        out_shape=jax.ShapeDtypeStruct((rows, _LANES), dtype),
        grid=grid,
        in_specs=[pl.BlockSpec((block_rows, _LANES), lambda i: (i, 0))],
        out_specs=pl.BlockSpec((block_rows, _LANES), lambda i: (i, 0)),
        compiler_params=pltpu.CompilerParams(
            dimension_semantics=("parallel",),
            vmem_limit_bytes=vmem_limit_bytes,
        ),
        cost_estimate=pl.CostEstimate(
            flops=2 * aligned,
            transcendentals=aligned,
            bytes_accessed=2 * aligned * itemsize,
        ),
    )(x2d)

    out_flat = out2d.reshape(-1)
    if aligned != total:
        tail = x_flat[aligned:]
        tail_y = (0.5 * (jnp.tanh(tail.astype(compute_dtype)) + 1.0)).astype(dtype)
        out_flat = jnp.concatenate([out_flat, tail_y])
    return out_flat.reshape(orig_shape)


if __name__ == "__main__":
    key = jax.random.PRNGKey(0)
    # Shape consistent with a conv-autoencoder activation: NCHW [2, 4, 16, 16]
    x = jax.random.normal(key, (2, 4, 16, 16), dtype=jnp.float32)

    y = jax.block_until_ready(scaled_tanh(x))

    # Correctness check against a plain-JAX reference.
    y_ref = 0.5 * (jnp.tanh(x) + 1.0)
    assert y.shape == x.shape and y.dtype == x.dtype
    assert jnp.allclose(y, y_ref, atol=1e-6, rtol=1e-6)

    print("KERNEL_OK")
</pallas_src>

<mosaic_0001>
module attributes {stable_mosaic.version = 11 : i64} {
  func.func @_scaled_tanh_kernel(%arg0: i32, %arg1: memref<16x128xf32, #tpu.memory_space<vmem>>, %arg2: memref<16x128xf32, #tpu.memory_space<vmem>>) attributes {dimension_semantics = [#tpu.dimension_semantics<parallel>], iteration_bounds = array<i64: 1>, scalar_prefetch = 0 : i64, scratch_operands = 0 : i64, tpu.core_type = #tpu.core_type<tc>, window_params = [{transform_indices = @transform_0, window_bounds = array<i64: 16, 128>}, {transform_indices = @transform_1, window_bounds = array<i64: 16, 128>}]} {
    %c0 = arith.constant 0 : index
    %c0_0 = arith.constant 0 : index
    %0 = vector.load %arg1[%c0, %c0_0] : memref<16x128xf32, #tpu.memory_space<vmem>>, vector<16x128xf32>
    %1 = math.tanh %0 : vector<16x128xf32>
    %cst = arith.constant 5.000000e-01 : f32
    %2 = vector.broadcast %cst : f32 to vector<16x128xf32>
    %3 = arith.mulf %2, %1 : vector<16x128xf32>
    %cst_1 = arith.constant 5.000000e-01 : f32
    %4 = vector.broadcast %cst_1 : f32 to vector<16x128xf32>
    %5 = arith.addf %3, %4 : vector<16x128xf32>
    %c0_2 = arith.constant 0 : index
    %c0_3 = arith.constant 0 : index
    %6 = vector.load %arg2[%c0_2, %c0_3] : memref<16x128xf32, #tpu.memory_space<vmem>>, vector<16x128xf32>
    tpu.vector_store %arg2[%c0_2, %c0_3], %5 {strides = array<i32>} : memref<16x128xf32, #tpu.memory_space<vmem>>, vector<16x128xf32>,
    return
  }
  func.func @transform_0(%arg0: i32) -> (i32, i32) {
    %c0_i32 = arith.constant 0 : i32
    %c0_i32_0 = arith.constant 0 : i32
    return %arg0, %c0_i32 : i32, i32
  }
  func.func @transform_1(%arg0: i32) -> (i32, i32) {
    %c0_i32 = arith.constant 0 : i32
    %c0_i32_0 = arith.constant 0 : i32
    return %arg0, %c0_i32 : i32, i32
  }
}

</mosaic_0001>

<llo_original>
// kernel: tpu_custom_call.1
$region0: #{tpu_custom_call.1}
  #allocation0 [shape = 'u32[]', space=smem, size = 0x4, offset = 0x4, fixed_abs, tag = 'smem constant byte address 0x4 - core index']
  #allocation1 [shape = 'u32[144,128]{1,0:T(1,128)}', space=vmem, size = 0x12000, scoped, tag = 'internal scratch']
  %s0 = inlined_call_operand.hbm [shape: f32[16,128], index: 0, kind: input, shape index: {}]
  %s1 = inlined_call_operand.hbm [shape: f32[16,128], index: 1, kind: output, shape index: {}]
  %s2 = sld [smem:[#allocation0]]
  $region18: #{tpu_custom_call.1} parent=0
    _
  %s4 = ssub.s32 1, %s2
  %s5 = scalar_select 0, %s4, %s2
  $region1: #{tpu_custom_call.1} parent=0
    #allocation2 [shape = 'u8[8192]{0}', space=vmem, size = 0x2000, scoped, tag = 'input window, operand 0, single buffered']
    #allocation3 [shape = 's32[1]{0}', space=sflag, size = 0x4, scoped, tag = 'scoped memory for tpu_custom_call.1']
    #allocation4 [shape = 's32[1]{0}', space=sflag, size = 0x4, scoped, tag = 'scoped memory for tpu_custom_call.1']
    #allocation5 [shape = 'u8[8192]{0}', space=vmem, size = 0x2000, scoped, tag = 'output window, operand 0, single buffered']
    %6 = vsyncpa [#allocation3], 0
    %7 = vsyncpa [#allocation4], 0
    // Predicated region
    $region2: #{tpu_custom_call.1} parent=1 // pred_check
      _
    $region3: #{tpu_custom_call.1} parent=1 // pred_check_branch
      %9 = sbr.rel (0) target = $region5
    $region4: #{tpu_custom_call.1} parent=1 // pred_region
      %s11 = ssub.s32 256, 256
      %12 = vsyncadd [#allocation3], %s11
      %s13 = sshll.u32 [#allocation2], 4
      %s14 = int_to_ptr.vmem [resolvable:$true] %s13
      %19 = dma.hbm_to_vmem [thread:$0]  %s0, 256, %s14, [#allocation3], 128, 128, 8
    $region5: #{tpu_custom_call.1} parent=1 // pred_fallthru
      _
    // Predicated region
    $region6: #{tpu_custom_call.1} parent=1 // pred_check
      _
    $region7: #{tpu_custom_call.1} parent=1 // pred_check_branch
      %21 = sbr.rel (0) target = $region9
    $region8: #{tpu_custom_call.1} parent=1 // pred_region
      %22 = dma.done [#allocation3], 256
    $region9: #{tpu_custom_call.1} parent=1 // pred_fallthru
      _
    %v23 = vld [vmem:[#allocation2] sm:$0xff]
    %v24 = vld [vmem:[#allocation2 + $0x8] sm:$0xff]
    %v25 = vtanh.pop %v23
    %v26 = vtanh.pop %v24
    %v27 = vmul.f32 %v25, 0.5
    %v28 = vmul.f32 %v26, 0.5
    %v29 = vadd.f32 %v27, 0.5
    %v30 = vadd.f32 %v28, 0.5
    %31 = vst [vmem:[#allocation5] sm:$0xff] %v29
    %32 = vst [vmem:[#allocation5 + $0x8] sm:$0xff] %v30
    // Predicated region
    $region10: #{tpu_custom_call.1} parent=1 // pred_check
      _
    $region11: #{tpu_custom_call.1} parent=1 // pred_check_branch
      %34 = sbr.rel (0) target = $region13
    $region12: #{tpu_custom_call.1} parent=1 // pred_region
      %s36 = ssub.s32 256, 256
      %37 = vsyncadd [#allocation4], %s36
      %s38 = sshll.u32 [#allocation5], 4
      %s39 = int_to_ptr.vmem [resolvable:$true] %s38
      %44 = dma.vmem_to_hbm [thread:$0]  %s39, 256, %s1, [#allocation4], 128, 128, 8
    $region13: #{tpu_custom_call.1} parent=1 // pred_fallthru
      _
    // Predicated region
    $region14: #{tpu_custom_call.1} parent=1 // pred_check
      _
    $region15: #{tpu_custom_call.1} parent=1 // pred_check_branch
      %46 = sbr.rel (0) target = $region17
    $region16: #{tpu_custom_call.1} parent=1 // pred_region
      %47 = dma.done [#allocation4], 256
    $region17: #{tpu_custom_call.1} parent=1 // pred_fallthru
      _
    %48 = vsyncpa [#allocation3], 1
    %49 = vsyncpa [#allocation4], 1

</llo_original>
